<compile_context>
chip_gen: v7x
topology: tpu7x:2x2x1
jax: 0.10.0
libtpu: 0.0.40
codegen_flags: <defaults>
</compile_context>

<pallas_src>
import jax
import jax.numpy as jnp
from jax.experimental import pallas as pl
from jax.experimental.pallas import tpu as pltpu


def _wlp_cls_kernel(w_ref, x_ref, o_ref):
    """w_ref: SMEM (Lu,) normalized weights (scalar prefetch).
    x_ref: VMEM (Lu, B_tile, H_tile) CLS hidden states.
    o_ref: VMEM (B_tile, H_tile) output tile."""
    lu = x_ref.shape[0]                      # static, small (3 - 12 typically)
    acc = w_ref[0] * x_ref[0].astype(jnp.float32)
    for l in range(1, lu):                   # unrolled scalar-mul-accumulate (VPU)
        acc = acc + w_ref[l] * x_ref[l].astype(jnp.float32)
    o_ref[...] = acc.astype(o_ref.dtype)


def _pick_tile(dim, max_tile, align):
    """Largest tile <= max_tile that is a multiple of `align` and divides `dim`;
    falls back to the full dim (always legal for the last two block dims)."""
    if dim <= max_tile or dim % align != 0:
        return dim
    t = (max_tile // align) * align
    while t > align and dim % t != 0:
        t -= align
    return t if dim % t == 0 else dim


def weighted_layer_pooling(all_hidden_states, layer_weights, layer_start):
    """all_hidden_states: (L, B, S, H).  Returns (B, H) = weighted CLS pooling."""
    L, B, S, H = all_hidden_states.shape
    Lu = L - layer_start
    assert Lu > 0, "layer_start must leave at least one hidden state"
    assert layer_weights.shape == (Lu,)

    # Only the CLS (seq position 0) slice is ever used -> slice before the kernel.
    x_cls = all_hidden_states[layer_start:, :, 0, :]          # (Lu, B, H)

    # Pre-normalize weights: sum_l w_l * x_l / sum(w)  ==  sum_l (w_l/sum(w)) * x_l
    w_norm = (layer_weights / jnp.sum(layer_weights)).astype(jnp.float32)

    # Lane-dense tiling: H -> lanes (mult. of 128 or full), B -> sublanes (mult. of 8 or full).
    bt = _pick_tile(B, 64, 8)
    ht = _pick_tile(H, 512, 128)
    grid = (B // bt, H // ht)

    out = pl.pallas_call(
        _wlp_cls_kernel,
        out_shape=jax.ShapeDtypeStruct((B, H), jnp.float32),
        grid_spec=pltpu.PrefetchScalarGridSpec(
            num_scalar_prefetch=1,                 # normalized weights -> SMEM
            grid=grid,
            in_specs=[
                pl.BlockSpec((Lu, bt, ht), lambda i, j, w: (0, i, j)),
            ],
            out_specs=pl.BlockSpec((bt, ht), lambda i, j, w: (i, j)),
        ),
        compiler_params=pltpu.CompilerParams(
            dimension_semantics=("parallel", "parallel"),   # independent output tiles
            vmem_limit_bytes=32 << 20,
        ),
    )(w_norm, x_cls)
    return out


def _reference(all_hidden_states, layer_weights, layer_start):
    x = all_hidden_states[layer_start:]
    wf = layer_weights[:, None, None, None]
    wavg = (wf * x).sum(axis=0) / layer_weights.sum()
    return wavg[:, 0]


if __name__ == "__main__":
    # Module config (synthetic, deterministic):
    num_hidden_layers = 4          # -> L = num_hidden_layers + 1 = 5 hidden states
    layer_start = 2
    hidden_size = 32
    batch, seq = 2, 8

    L = num_hidden_layers + 1
    n_used = L - layer_start

    key = jax.random.PRNGKey(0)
    k_x, _ = jax.random.split(key)
    all_hidden_states = jax.random.normal(
        k_x, (L, batch, seq, hidden_size), dtype=jnp.float32
    )
    # Default init in the module: weights = 1 for each used layer.
    layer_weights = jnp.ones((n_used,), dtype=jnp.float32)

    out = weighted_layer_pooling(all_hidden_states, layer_weights, layer_start)
    out = jax.block_until_ready(out)

    ref = _reference(all_hidden_states, layer_weights, layer_start)
    assert out.shape == (batch, hidden_size), out.shape
    assert jnp.allclose(out, ref, atol=1e-5, rtol=1e-5), "mismatch vs reference"

    print("KERNEL_OK")
</pallas_src>

<mosaic_0001>
module attributes {stable_mosaic.version = 11 : i64} {
  func.func @_wlp_cls_kernel(%arg0: i32, %arg1: i32, %arg2: memref<3xf32, #tpu.memory_space<smem>>, %arg3: memref<3x2x32xf32, #tpu.memory_space<vmem>>, %arg4: memref<2x32xf32, #tpu.memory_space<vmem>>) attributes {dimension_semantics = [#tpu.dimension_semantics<parallel>, #tpu.dimension_semantics<parallel>], iteration_bounds = array<i64: 1, 1>, scalar_prefetch = 1 : i64, scratch_operands = 0 : i64, tpu.core_type = #tpu.core_type<tc>, window_params = [{transform_indices = @transform_0, window_bounds = array<i64: 3, 2, 32>}, {transform_indices = @transform_1, window_bounds = array<i64: 2, 32>}]} {
    %c0 = arith.constant 0 : index
    %0 = memref.load %arg2[%c0] : memref<3xf32, #tpu.memory_space<smem>>
    %c0_0 = arith.constant 0 : index
    %c0_1 = arith.constant 0 : index
    %c0_2 = arith.constant 0 : index
    %1 = vector.load %arg3[%c0_0, %c0_1, %c0_2] : memref<3x2x32xf32, #tpu.memory_space<vmem>>, vector<1x2x32xf32>
    %2 = vector.shape_cast %1 : vector<1x2x32xf32> to vector<2x32xf32>
    %3 = vector.broadcast %0 : f32 to vector<2x32xf32>
    %4 = arith.mulf %3, %2 : vector<2x32xf32>
    %c1 = arith.constant 1 : index
    %5 = memref.load %arg2[%c1] : memref<3xf32, #tpu.memory_space<smem>>
    %c1_3 = arith.constant 1 : index
    %c0_4 = arith.constant 0 : index
    %c0_5 = arith.constant 0 : index
    %6 = vector.load %arg3[%c1_3, %c0_4, %c0_5] : memref<3x2x32xf32, #tpu.memory_space<vmem>>, vector<1x2x32xf32>
    %7 = vector.shape_cast %6 : vector<1x2x32xf32> to vector<2x32xf32>
    %8 = vector.broadcast %5 : f32 to vector<2x32xf32>
    %9 = arith.mulf %8, %7 : vector<2x32xf32>
    %10 = arith.addf %4, %9 : vector<2x32xf32>
    %c2 = arith.constant 2 : index
    %11 = memref.load %arg2[%c2] : memref<3xf32, #tpu.memory_space<smem>>
    %c2_6 = arith.constant 2 : index
    %c0_7 = arith.constant 0 : index
    %c0_8 = arith.constant 0 : index
    %12 = vector.load %arg3[%c2_6, %c0_7, %c0_8] : memref<3x2x32xf32, #tpu.memory_space<vmem>>, vector<1x2x32xf32>
    %13 = vector.shape_cast %12 : vector<1x2x32xf32> to vector<2x32xf32>
    %14 = vector.broadcast %11 : f32 to vector<2x32xf32>
    %15 = arith.mulf %14, %13 : vector<2x32xf32>
    %16 = arith.addf %10, %15 : vector<2x32xf32>
    %c0_9 = arith.constant 0 : index
    %c0_10 = arith.constant 0 : index
    %17 = vector.load %arg4[%c0_9, %c0_10] : memref<2x32xf32, #tpu.memory_space<vmem>>, vector<2x32xf32>
    tpu.vector_store %arg4[%c0_9, %c0_10], %16 {strides = array<i32>} : memref<2x32xf32, #tpu.memory_space<vmem>>, vector<2x32xf32>,
    return
  }
  func.func @transform_0(%arg0: i32, %arg1: i32, %arg2: memref<3xf32, #tpu.memory_space<smem>>) -> (i32, i32, i32) {
    %c0_i32 = arith.constant 0 : i32
    %c0_i32_0 = arith.constant 0 : i32
    return %c0_i32, %arg0, %arg1 : i32, i32, i32
  }
  func.func @transform_1(%arg0: i32, %arg1: i32, %arg2: memref<3xf32, #tpu.memory_space<smem>>) -> (i32, i32) {
    %c0_i32 = arith.constant 0 : i32
    return %arg0, %arg1 : i32, i32
  }
}

</mosaic_0001>

<llo_original>
// kernel: tpu_custom_call.1
$region0: #{tpu_custom_call.1}
  #allocation0 [shape = 'u32[]', space=smem, size = 0x4, offset = 0x4, fixed_abs, tag = 'smem constant byte address 0x4 - core index']
  #allocation1 [shape = 'u32[144,128]{1,0:T(1,128)}', space=vmem, size = 0x12000, scoped, tag = 'internal scratch']
  #allocation2 [shape = 's32[1]{0}', space=sflag, size = 0x4, scoped, tag = 'scoped memory for tpu_custom_call.1']
  #allocation3 [shape = 'u8[512]{0}', space=smem, size = 0x200, scoped, tag = 'prefetched SMEM operand 0']
  %s0 = inlined_call_operand.hbm [shape: f32[3], index: 0, kind: input, shape index: {}]
  %s1 = inlined_call_operand.hbm [shape: f32[3,2,32], index: 1, kind: input, shape index: {}]
  %s2 = inlined_call_operand.hbm [shape: f32[2,32], index: 2, kind: output, shape index: {}]
  %s3 = sld [smem:[#allocation0]]
  $region18: #{tpu_custom_call.1} parent=0
    _
  %s5 = ssub.s32 1, %s3
  %s6 = scalar_select 0, %s5, %s3
  %8 = dma.hbm_to_smem %s0, 16, [#allocation3], [#allocation2]
  %9 = dma.done [#allocation2], 16
  %10 = sfence
  $region1: #{tpu_custom_call.1} parent=0
    #allocation4 [shape = 'u8[3072]{0}', space=vmem, size = 0xc00, scoped, tag = 'input window, operand 1, single buffered']
    #allocation5 [shape = 's32[1]{0}', space=sflag, size = 0x4, scoped, tag = 'scoped memory for tpu_custom_call.1']
    #allocation6 [shape = 's32[1]{0}', space=sflag, size = 0x4, scoped, tag = 'scoped memory for tpu_custom_call.1']
    #allocation7 [shape = 'u8[1024]{0}', space=vmem, size = 0x400, scoped, tag = 'output window, operand 0, single buffered']
    %11 = vsyncpa [#allocation5], 0
    %12 = vsyncpa [#allocation6], 0
    // Predicated region
    $region2: #{tpu_custom_call.1} parent=1 // pred_check
      _
    $region3: #{tpu_custom_call.1} parent=1 // pred_check_branch
      %14 = sbr.rel (0) target = $region5
    $region4: #{tpu_custom_call.1} parent=1 // pred_region
      %s16 = ssub.s32 96, 96
      %17 = vsyncadd [#allocation5], %s16
      %s18 = sshll.u32 [#allocation4], 4
      %s19 = int_to_ptr.vmem [resolvable:$true] %s18
      %24 = dma.hbm_to_vmem [thread:$0]  %s1, 96, %s19, [#allocation5], 32, 32, 2
    $region5: #{tpu_custom_call.1} parent=1 // pred_fallthru
      _
    // Predicated region
    $region6: #{tpu_custom_call.1} parent=1 // pred_check
      _
    $region7: #{tpu_custom_call.1} parent=1 // pred_check_branch
      %26 = sbr.rel (0) target = $region9
    $region8: #{tpu_custom_call.1} parent=1 // pred_region
      %27 = dma.done [#allocation5], 96
    $region9: #{tpu_custom_call.1} parent=1 // pred_fallthru
      _
    %s28 = sld [smem:[#allocation3]]
    %v29 = vld [vmem:[#allocation4] sm:$0x3]
    %v30 = vstv %s28
    %v31 = vmul.f32 %v30, %v29
    %s32 = sld [smem:[#allocation3 + $0x1]]
    %s33 = scalar_lea.vmem [#allocation4], 2
    %v34 = vld [vmem:[%s33] sm:$0x3]
    %v35 = vstv %s32
    %v36 = vmul.f32 %v35, %v34
    %v37 = vadd.f32 %v31, %v36
    %s38 = sld [smem:[#allocation3 + $0x2]]
    %s39 = scalar_lea.vmem [#allocation4], 4
    %v40 = vld [vmem:[%s39] sm:$0x3]
    %v41 = vstv %s38
    %v42 = vmul.f32 %v41, %v40
    %v43 = vadd.f32 %v37, %v42
    %vm44 = vcmask 254976
    %45 = vst.msk [vmem:[#allocation7] sm:$0x3] %vm44, %v43
    // Predicated region
    $region10: #{tpu_custom_call.1} parent=1 // pred_check
      _
    $region11: #{tpu_custom_call.1} parent=1 // pred_check_branch
      %47 = sbr.rel (0) target = $region13
    $region12: #{tpu_custom_call.1} parent=1 // pred_region
      %s49 = ssub.s32 32, 32
      %50 = vsyncadd [#allocation6], %s49
      %s52 = sshll.u32 [#allocation7], 4
      %s53 = int_to_ptr.vmem [resolvable:$true] %s52
      %55 = dma.vmem_to_hbm [thread:$0]  %s53, 32, %s2, [#allocation6]
    $region13: #{tpu_custom_call.1} parent=1 // pred_fallthru
      _
    // Predicated region
    $region14: #{tpu_custom_call.1} parent=1 // pred_check
      _
    $region15: #{tpu_custom_call.1} parent=1 // pred_check_branch
      %57 = sbr.rel (0) target = $region17
    $region16: #{tpu_custom_call.1} parent=1 // pred_region
      %58 = dma.done [#allocation6], 32
    $region17: #{tpu_custom_call.1} parent=1 // pred_fallthru
      _
    %59 = vsyncpa [#allocation5], 1
    %60 = vsyncpa [#allocation6], 1

</llo_original>
